<compile_context>
chip_gen: v7x
topology: tpu7x:2x2x1
jax: 0.10.0
libtpu: 0.0.40
codegen_flags: <defaults>
</compile_context>

<pallas_src>
import jax
import jax.numpy as jnp
from jax import lax
from jax.experimental import pallas as pl
from jax.experimental.pallas import tpu as pltpu


# ----------------------------------------------------------------------------
# Kernel: layer-0 LSTM recurrence (unrolled over T) + hidden half of the head.
# Single invocation; h/c are vreg-resident values; x-projection in VMEM scratch.
# ----------------------------------------------------------------------------
def lstm_fused_kernel(xflat_ref,    # (T*B, I)  time-major flattened input
                      wih_ref,      # (I, 4H)   W_ih^T (gate order i,f,g,o)
                      whh_ref,      # (H, 4H)   W_hh^T
                      b_ref,        # (1, 4H)   b_ih + b_hh
                      wh_out_ref,   # (H, O)    output weight, hidden part
                      aux_add_ref,  # (B, O)    precomputed aux @ W_aux^T + b_out
                      out_ref,      # (B, O)
                      xproj_ref):   # scratch: (T*B, 4H) VMEM
    TB = xflat_ref.shape[0]
    B = out_ref.shape[0]
    T = TB // B
    H = whh_ref.shape[0]

    # One consolidated input projection for all timesteps. Independent of h,
    # so it is off the serial recurrence chain; staging it in VMEM scratch
    # bounds vreg live ranges across the unrolled loop.
    xproj_ref[...] = (
        jnp.dot(xflat_ref[...], wih_ref[...], preferred_element_type=jnp.float32)
        + b_ref[...])

    whh = whh_ref[...]
    h = jnp.zeros((B, H), jnp.float32)
    c = jnp.zeros((B, H), jnp.float32)

    for t in range(T):  # serial recurrence, fully unrolled (T small & static)
        gates = xproj_ref[t * B:(t + 1) * B, :] + jnp.dot(
            h, whh, preferred_element_type=jnp.float32)
        # One sigmoid pass over the full 128-lane gate vector, then lane-slice
        # the i/f/o slots; one tanh for the g slot. PyTorch gate order i,f,g,o.
        sg = jax.nn.sigmoid(gates)
        i_g = sg[:, 0 * H:1 * H]
        f_g = sg[:, 1 * H:2 * H]
        o_g = sg[:, 3 * H:4 * H]
        g_g = jnp.tanh(gates[:, 2 * H:3 * H])
        c = f_g * c + i_g * g_g
        h = o_g * jnp.tanh(c)

    # Head: hidden half in-kernel; aux half was hoisted to the wrapper.
    out_ref[...] = (
        jnp.dot(h, wh_out_ref[...], preferred_element_type=jnp.float32)
        + aux_add_ref[...]).astype(out_ref.dtype)


# ----------------------------------------------------------------------------
# One-time weight-layout preparation (cache the result; do NOT rerun per call).
# ----------------------------------------------------------------------------
def prepare_params(params):
    w_ih = params["w_ih_l0"]                    # (4H, I)
    w_hh = params["w_hh_l0"]                    # (4H, H)
    H = w_hh.shape[1]
    w_out = params["w_out"]                     # (O, H + A)
    return {
        "wih_t": jnp.asarray(w_ih.T),                                   # (I, 4H)
        "whh_t": jnp.asarray(w_hh.T),                                   # (H, 4H)
        "b": (params["b_ih_l0"] + params["b_hh_l0"]).reshape(1, -1),    # (1, 4H)
        "wh_out_t": jnp.asarray(w_out[:, :H].T),                        # (H, O)
        "wa_out_t": jnp.asarray(w_out[:, H:].T),                        # (A, O)
        "b_out2": params["b_out"].reshape(1, -1),                       # (1, O)
    }


def lstm_x1_x2_forward(primary_input, auxiliary_input, prep):
    """primary_input: (B, T, I) float32; auxiliary_input: (B, A) any dtype."""
    B, T, I = primary_input.shape
    aux = auxiliary_input.astype(jnp.float32)

    # Aux half of the head does not depend on the LSTM -> hoisted out of kernel.
    aux_add = aux @ prep["wa_out_t"] + prep["b_out2"]                   # (B, O)
    O = aux_add.shape[1]
    H4 = prep["whh_t"].shape[1]

    if T == 0:  # degenerate: LSTM never runs, h stays zero.
        return aux_add

    # Time-major flatten: rows [t*B, (t+1)*B) are timestep t.
    x_flat = jnp.transpose(primary_input, (1, 0, 2)).reshape(T * B, I)

    vmem = pl.BlockSpec(memory_space=pltpu.MemorySpace.VMEM)
    return pl.pallas_call(
        lstm_fused_kernel,
        out_shape=jax.ShapeDtypeStruct((B, O), jnp.float32),
        in_specs=[vmem] * 6,
        out_specs=vmem,
        scratch_shapes=[pltpu.VMEM((T * B, H4), jnp.float32)],
    )(x_flat, prep["wih_t"], prep["whh_t"], prep["b"],
      prep["wh_out_t"], aux_add)


# ----------------------------------------------------------------------------
# Pure-JAX reference (correctness check only).
# ----------------------------------------------------------------------------
def reference_forward(primary_input, auxiliary_input, params):
    B, T, I = primary_input.shape
    w_ih, w_hh = params["w_ih_l0"], params["w_hh_l0"]
    b = params["b_ih_l0"] + params["b_hh_l0"]
    H = w_hh.shape[1]

    def step(carry, x_t):
        h, c = carry
        gates = x_t @ w_ih.T + h @ w_hh.T + b
        i = jax.nn.sigmoid(gates[:, 0 * H:1 * H])
        f = jax.nn.sigmoid(gates[:, 1 * H:2 * H])
        g = jnp.tanh(gates[:, 2 * H:3 * H])
        o = jax.nn.sigmoid(gates[:, 3 * H:4 * H])
        c = f * c + i * g
        h = o * jnp.tanh(c)
        return (h, c), None

    h0 = jnp.zeros((B, H), jnp.float32)
    (h_final, _), _ = lax.scan(step, (h0, h0),
                               jnp.transpose(primary_input, (1, 0, 2)))
    combined = jnp.concatenate(
        [h_final, auxiliary_input.astype(jnp.float32)], axis=1)
    return combined @ params["w_out"].T + params["b_out"]


# ----------------------------------------------------------------------------
# Deterministic parameter init (PyTorch-style uniform(-1/sqrt(H), 1/sqrt(H))).
# ----------------------------------------------------------------------------
def init_params(key, input_size, hidden_size, num_layers, output_size, aux_dim):
    bound = 1.0 / jnp.sqrt(hidden_size)
    keys = jax.random.split(key, 4 * num_layers + 2)
    params = {}
    for layer in range(num_layers):
        in_sz = input_size if layer == 0 else hidden_size
        k = keys[4 * layer:4 * layer + 4]
        params[f"w_ih_l{layer}"] = jax.random.uniform(
            k[0], (4 * hidden_size, in_sz), jnp.float32, -bound, bound)
        params[f"w_hh_l{layer}"] = jax.random.uniform(
            k[1], (4 * hidden_size, hidden_size), jnp.float32, -bound, bound)
        params[f"b_ih_l{layer}"] = jax.random.uniform(
            k[2], (4 * hidden_size,), jnp.float32, -bound, bound)
        params[f"b_hh_l{layer}"] = jax.random.uniform(
            k[3], (4 * hidden_size,), jnp.float32, -bound, bound)
    out_bound = 1.0 / jnp.sqrt(hidden_size + aux_dim)
    params["w_out"] = jax.random.uniform(
        keys[-2], (output_size, hidden_size + aux_dim), jnp.float32,
        -out_bound, out_bound)
    params["b_out"] = jax.random.uniform(
        keys[-1], (output_size,), jnp.float32, -out_bound, out_bound)
    return params


if __name__ == "__main__":
    # Module config
    input_size, hidden_size, num_layers = 4, 32, 2
    output_size, aux_dim = 16, 8
    B, T = 2, 8

    key = jax.random.PRNGKey(0)
    k_p, k_x, k_a = jax.random.split(key, 3)
    params = init_params(k_p, input_size, hidden_size, num_layers,
                         output_size, aux_dim)

    primary_input = jax.random.normal(k_x, (B, T, input_size), jnp.float32)
    auxiliary_input = jax.random.normal(k_a, (B, aux_dim), jnp.float32)

    prep = prepare_params(params)          # one-time weight-layout prep (cached)
    fwd = jax.jit(lstm_x1_x2_forward)

    out = jax.block_until_ready(fwd(primary_input, auxiliary_input, prep))

    ref = reference_forward(primary_input, auxiliary_input, params)
    assert out.shape == (B, output_size)
    assert jnp.allclose(out, ref, atol=1e-5, rtol=1e-5), (
        f"mismatch: max abs err {jnp.max(jnp.abs(out - ref))}")

    print("KERNEL_OK")
</pallas_src>

<mosaic_0001>
module attributes {stable_mosaic.version = 11 : i64} {
  func.func @lstm_fused_kernel(%arg0: memref<16x4xf32, #tpu.memory_space<vmem>>, %arg1: memref<4x128xf32, #tpu.memory_space<vmem>>, %arg2: memref<32x128xf32, #tpu.memory_space<vmem>>, %arg3: memref<1x128xf32, #tpu.memory_space<vmem>>, %arg4: memref<32x16xf32, #tpu.memory_space<vmem>>, %arg5: memref<2x16xf32, #tpu.memory_space<vmem>>, %arg6: memref<2x16xf32, #tpu.memory_space<vmem>>, %arg7: memref<16x128xf32, #tpu.memory_space<vmem>>) attributes {dimension_semantics = [], scalar_prefetch = 0 : i64, scratch_operands = 1 : i64, tpu.core_type = #tpu.core_type<tc>} {
    %c0 = arith.constant 0 : index
    %c0_0 = arith.constant 0 : index
    %0 = vector.load %arg0[%c0, %c0_0] : memref<16x4xf32, #tpu.memory_space<vmem>>, vector<16x4xf32>
    %c0_1 = arith.constant 0 : index
    %c0_2 = arith.constant 0 : index
    %1 = vector.load %arg1[%c0_1, %c0_2] : memref<4x128xf32, #tpu.memory_space<vmem>>, vector<4x128xf32>
    %cst = arith.constant dense<0.000000e+00> : vector<16x128xf32>
    %2 = tpu.matmul %0, %1, %cst {dimension_numbers = #tpu.dot_dimension_numbers<[1], [0], [0], [1], [0, 0, 1, 1], [], []>} : vector<16x4xf32>, vector<4x128xf32>, vector<16x128xf32> -> vector<16x128xf32>
    %c0_3 = arith.constant 0 : index
    %c0_4 = arith.constant 0 : index
    %3 = vector.load %arg3[%c0_3, %c0_4] : memref<1x128xf32, #tpu.memory_space<vmem>>, vector<1x128xf32>
    %4 = vector.broadcast %3 : vector<1x128xf32> to vector<16x128xf32>
    %5 = arith.addf %2, %4 : vector<16x128xf32>
    %c0_5 = arith.constant 0 : index
    %c0_6 = arith.constant 0 : index
    %6 = vector.load %arg7[%c0_5, %c0_6] : memref<16x128xf32, #tpu.memory_space<vmem>>, vector<16x128xf32>
    tpu.vector_store %arg7[%c0_5, %c0_6], %5 {strides = array<i32>} : memref<16x128xf32, #tpu.memory_space<vmem>>, vector<16x128xf32>,
    %c0_7 = arith.constant 0 : index
    %c0_8 = arith.constant 0 : index
    %7 = vector.load %arg2[%c0_7, %c0_8] : memref<32x128xf32, #tpu.memory_space<vmem>>, vector<32x128xf32>
    %cst_9 = arith.constant 0.000000e+00 : f32
    %8 = vector.broadcast %cst_9 : f32 to vector<2x32xf32>
    %cst_10 = arith.constant 0.000000e+00 : f32
    %9 = vector.broadcast %cst_10 : f32 to vector<2x32xf32>
    %c0_11 = arith.constant 0 : index
    %c0_12 = arith.constant 0 : index
    %10 = vector.load %arg7[%c0_11, %c0_12] : memref<16x128xf32, #tpu.memory_space<vmem>>, vector<2x128xf32>
    %cst_13 = arith.constant dense<0.000000e+00> : vector<2x128xf32>
    %11 = tpu.matmul %8, %7, %cst_13 {dimension_numbers = #tpu.dot_dimension_numbers<[1], [0], [0], [1], [0, 0, 1, 1], [], []>} : vector<2x32xf32>, vector<32x128xf32>, vector<2x128xf32> -> vector<2x128xf32>
    %12 = arith.addf %10, %11 : vector<2x128xf32>
    %13 = arith.negf %12 : vector<2x128xf32>
    %14 = math.exp %13 : vector<2x128xf32>
    %cst_14 = arith.constant 1.000000e+00 : f32
    %15 = vector.broadcast %cst_14 : f32 to vector<2x128xf32>
    %16 = arith.addf %15, %14 : vector<2x128xf32>
    %17 = arith.divf %15, %16 : vector<2x128xf32>
    %18 = vector.extract_strided_slice %17 {offsets = [0, 0], sizes = [2, 32], strides = [1, 1]} : vector<2x128xf32> to vector<2x32xf32>
    %19 = vector.extract_strided_slice %17 {offsets = [0, 32], sizes = [2, 32], strides = [1, 1]} : vector<2x128xf32> to vector<2x32xf32>
    %20 = vector.extract_strided_slice %17 {offsets = [0, 96], sizes = [2, 32], strides = [1, 1]} : vector<2x128xf32> to vector<2x32xf32>
    %21 = vector.extract_strided_slice %12 {offsets = [0, 64], sizes = [2, 32], strides = [1, 1]} : vector<2x128xf32> to vector<2x32xf32>
    %22 = math.tanh %21 : vector<2x32xf32>
    %23 = arith.mulf %19, %9 : vector<2x32xf32>
    %24 = arith.mulf %18, %22 : vector<2x32xf32>
    %25 = arith.addf %23, %24 : vector<2x32xf32>
    %26 = math.tanh %25 : vector<2x32xf32>
    %27 = arith.mulf %20, %26 : vector<2x32xf32>
    %c2 = arith.constant 2 : index
    %c0_15 = arith.constant 0 : index
    %28 = vector.load %arg7[%c2, %c0_15] : memref<16x128xf32, #tpu.memory_space<vmem>>, vector<2x128xf32>
    %cst_16 = arith.constant dense<0.000000e+00> : vector<2x128xf32>
    %29 = tpu.matmul %27, %7, %cst_16 {dimension_numbers = #tpu.dot_dimension_numbers<[1], [0], [0], [1], [0, 0, 1, 1], [], []>} : vector<2x32xf32>, vector<32x128xf32>, vector<2x128xf32> -> vector<2x128xf32>
    %30 = arith.addf %28, %29 : vector<2x128xf32>
    %31 = arith.negf %30 : vector<2x128xf32>
    %32 = math.exp %31 : vector<2x128xf32>
    %cst_17 = arith.constant 1.000000e+00 : f32
    %33 = vector.broadcast %cst_17 : f32 to vector<2x128xf32>
    %34 = arith.addf %33, %32 : vector<2x128xf32>
    %35 = arith.divf %33, %34 : vector<2x128xf32>
    %36 = vector.extract_strided_slice %35 {offsets = [0, 0], sizes = [2, 32], strides = [1, 1]} : vector<2x128xf32> to vector<2x32xf32>
    %37 = vector.extract_strided_slice %35 {offsets = [0, 32], sizes = [2, 32], strides = [1, 1]} : vector<2x128xf32> to vector<2x32xf32>
    %38 = vector.extract_strided_slice %35 {offsets = [0, 96], sizes = [2, 32], strides = [1, 1]} : vector<2x128xf32> to vector<2x32xf32>
    %39 = vector.extract_strided_slice %30 {offsets = [0, 64], sizes = [2, 32], strides = [1, 1]} : vector<2x128xf32> to vector<2x32xf32>
    %40 = math.tanh %39 : vector<2x32xf32>
    %41 = arith.mulf %37, %25 : vector<2x32xf32>
    %42 = arith.mulf %36, %40 : vector<2x32xf32>
    %43 = arith.addf %41, %42 : vector<2x32xf32>
    %44 = math.tanh %43 : vector<2x32xf32>
    %45 = arith.mulf %38, %44 : vector<2x32xf32>
    %c4 = arith.constant 4 : index
    %c0_18 = arith.constant 0 : index
    %46 = vector.load %arg7[%c4, %c0_18] : memref<16x128xf32, #tpu.memory_space<vmem>>, vector<2x128xf32>
    %cst_19 = arith.constant dense<0.000000e+00> : vector<2x128xf32>
    %47 = tpu.matmul %45, %7, %cst_19 {dimension_numbers = #tpu.dot_dimension_numbers<[1], [0], [0], [1], [0, 0, 1, 1], [], []>} : vector<2x32xf32>, vector<32x128xf32>, vector<2x128xf32> -> vector<2x128xf32>
    %48 = arith.addf %46, %47 : vector<2x128xf32>
    %49 = arith.negf %48 : vector<2x128xf32>
    %50 = math.exp %49 : vector<2x128xf32>
    %cst_20 = arith.constant 1.000000e+00 : f32
    %51 = vector.broadcast %cst_20 : f32 to vector<2x128xf32>
    %52 = arith.addf %51, %50 : vector<2x128xf32>
    %53 = arith.divf %51, %52 : vector<2x128xf32>
    %54 = vector.extract_strided_slice %53 {offsets = [0, 0], sizes = [2, 32], strides = [1, 1]} : vector<2x128xf32> to vector<2x32xf32>
    %55 = vector.extract_strided_slice %53 {offsets = [0, 32], sizes = [2, 32], strides = [1, 1]} : vector<2x128xf32> to vector<2x32xf32>
    %56 = vector.extract_strided_slice %53 {offsets = [0, 96], sizes = [2, 32], strides = [1, 1]} : vector<2x128xf32> to vector<2x32xf32>
    %57 = vector.extract_strided_slice %48 {offsets = [0, 64], sizes = [2, 32], strides = [1, 1]} : vector<2x128xf32> to vector<2x32xf32>
    %58 = math.tanh %57 : vector<2x32xf32>
    %59 = arith.mulf %55, %43 : vector<2x32xf32>
    %60 = arith.mulf %54, %58 : vector<2x32xf32>
    %61 = arith.addf %59, %60 : vector<2x32xf32>
    %62 = math.tanh %61 : vector<2x32xf32>
    %63 = arith.mulf %56, %62 : vector<2x32xf32>
    %c6 = arith.constant 6 : index
    %c0_21 = arith.constant 0 : index
    %64 = vector.load %arg7[%c6, %c0_21] : memref<16x128xf32, #tpu.memory_space<vmem>>, vector<2x128xf32>
    %cst_22 = arith.constant dense<0.000000e+00> : vector<2x128xf32>
    %65 = tpu.matmul %63, %7, %cst_22 {dimension_numbers = #tpu.dot_dimension_numbers<[1], [0], [0], [1], [0, 0, 1, 1], [], []>} : vector<2x32xf32>, vector<32x128xf32>, vector<2x128xf32> -> vector<2x128xf32>
    %66 = arith.addf %64, %65 : vector<2x128xf32>
    %67 = arith.negf %66 : vector<2x128xf32>
    %68 = math.exp %67 : vector<2x128xf32>
    %cst_23 = arith.constant 1.000000e+00 : f32
    %69 = vector.broadcast %cst_23 : f32 to vector<2x128xf32>
    %70 = arith.addf %69, %68 : vector<2x128xf32>
    %71 = arith.divf %69, %70 : vector<2x128xf32>
    %72 = vector.extract_strided_slice %71 {offsets = [0, 0], sizes = [2, 32], strides = [1, 1]} : vector<2x128xf32> to vector<2x32xf32>
    %73 = vector.extract_strided_slice %71 {offsets = [0, 32], sizes = [2, 32], strides = [1, 1]} : vector<2x128xf32> to vector<2x32xf32>
    %74 = vector.extract_strided_slice %71 {offsets = [0, 96], sizes = [2, 32], strides = [1, 1]} : vector<2x128xf32> to vector<2x32xf32>
    %75 = vector.extract_strided_slice %66 {offsets = [0, 64], sizes = [2, 32], strides = [1, 1]} : vector<2x128xf32> to vector<2x32xf32>
    %76 = math.tanh %75 : vector<2x32xf32>
    %77 = arith.mulf %73, %61 : vector<2x32xf32>
    %78 = arith.mulf %72, %76 : vector<2x32xf32>
    %79 = arith.addf %77, %78 : vector<2x32xf32>
    %80 = math.tanh %79 : vector<2x32xf32>
    %81 = arith.mulf %74, %80 : vector<2x32xf32>
    %c8 = arith.constant 8 : index
    %c0_24 = arith.constant 0 : index
    %82 = vector.load %arg7[%c8, %c0_24] : memref<16x128xf32, #tpu.memory_space<vmem>>, vector<2x128xf32>
    %cst_25 = arith.constant dense<0.000000e+00> : vector<2x128xf32>
    %83 = tpu.matmul %81, %7, %cst_25 {dimension_numbers = #tpu.dot_dimension_numbers<[1], [0], [0], [1], [0, 0, 1, 1], [], []>} : vector<2x32xf32>, vector<32x128xf32>, vector<2x128xf32> -> vector<2x128xf32>
    %84 = arith.addf %82, %83 : vector<2x128xf32>
    %85 = arith.negf %84 : vector<2x128xf32>
    %86 = math.exp %85 : vector<2x128xf32>
    %cst_26 = arith.constant 1.000000e+00 : f32
    %87 = vector.broadcast %cst_26 : f32 to vector<2x128xf32>
    %88 = arith.addf %87, %86 : vector<2x128xf32>
    %89 = arith.divf %87, %88 : vector<2x128xf32>
    %90 = vector.extract_strided_slice %89 {offsets = [0, 0], sizes = [2, 32], strides = [1, 1]} : vector<2x128xf32> to vector<2x32xf32>
    %91 = vector.extract_strided_slice %89 {offsets = [0, 32], sizes = [2, 32], strides = [1, 1]} : vector<2x128xf32> to vector<2x32xf32>
    %92 = vector.extract_strided_slice %89 {offsets = [0, 96], sizes = [2, 32], strides = [1, 1]} : vector<2x128xf32> to vector<2x32xf32>
    %93 = vector.extract_strided_slice %84 {offsets = [0, 64], sizes = [2, 32], strides = [1, 1]} : vector<2x128xf32> to vector<2x32xf32>
    %94 = math.tanh %93 : vector<2x32xf32>
    %95 = arith.mulf %91, %79 : vector<2x32xf32>
    %96 = arith.mulf %90, %94 : vector<2x32xf32>
    %97 = arith.addf %95, %96 : vector<2x32xf32>
    %98 = math.tanh %97 : vector<2x32xf32>
    %99 = arith.mulf %92, %98 : vector<2x32xf32>
    %c10 = arith.constant 10 : index
    %c0_27 = arith.constant 0 : index
    %100 = vector.load %arg7[%c10, %c0_27] : memref<16x128xf32, #tpu.memory_space<vmem>>, vector<2x128xf32>
    %cst_28 = arith.constant dense<0.000000e+00> : vector<2x128xf32>
    %101 = tpu.matmul %99, %7, %cst_28 {dimension_numbers = #tpu.dot_dimension_numbers<[1], [0], [0], [1], [0, 0, 1, 1], [], []>} : vector<2x32xf32>, vector<32x128xf32>, vector<2x128xf32> -> vector<2x128xf32>
    %102 = arith.addf %100, %101 : vector<2x128xf32>
    %103 = arith.negf %102 : vector<2x128xf32>
    %104 = math.exp %103 : vector<2x128xf32>
    %cst_29 = arith.constant 1.000000e+00 : f32
    %105 = vector.broadcast %cst_29 : f32 to vector<2x128xf32>
    %106 = arith.addf %105, %104 : vector<2x128xf32>
    %107 = arith.divf %105, %106 : vector<2x128xf32>
    %108 = vector.extract_strided_slice %107 {offsets = [0, 0], sizes = [2, 32], strides = [1, 1]} : vector<2x128xf32> to vector<2x32xf32>
    %109 = vector.extract_strided_slice %107 {offsets = [0, 32], sizes = [2, 32], strides = [1, 1]} : vector<2x128xf32> to vector<2x32xf32>
    %110 = vector.extract_strided_slice %107 {offsets = [0, 96], sizes = [2, 32], strides = [1, 1]} : vector<2x128xf32> to vector<2x32xf32>
    %111 = vector.extract_strided_slice %102 {offsets = [0, 64], sizes = [2, 32], strides = [1, 1]} : vector<2x128xf32> to vector<2x32xf32>
    %112 = math.tanh %111 : vector<2x32xf32>
    %113 = arith.mulf %109, %97 : vector<2x32xf32>
    %114 = arith.mulf %108, %112 : vector<2x32xf32>
    %115 = arith.addf %113, %114 : vector<2x32xf32>
    %116 = math.tanh %115 : vector<2x32xf32>
    %117 = arith.mulf %110, %116 : vector<2x32xf32>
    %c12 = arith.constant 12 : index
    %c0_30 = arith.constant 0 : index
    %118 = vector.load %arg7[%c12, %c0_30] : memref<16x128xf32, #tpu.memory_space<vmem>>, vector<2x128xf32>
    %cst_31 = arith.constant dense<0.000000e+00> : vector<2x128xf32>
    %119 = tpu.matmul %117, %7, %cst_31 {dimension_numbers = #tpu.dot_dimension_numbers<[1], [0], [0], [1], [0, 0, 1, 1], [], []>} : vector<2x32xf32>, vector<32x128xf32>, vector<2x128xf32> -> vector<2x128xf32>
    %120 = arith.addf %118, %119 : vector<2x128xf32>
    %121 = arith.negf %120 : vector<2x128xf32>
    %122 = math.exp %121 : vector<2x128xf32>
    %cst_32 = arith.constant 1.000000e+00 : f32
    %123 = vector.broadcast %cst_32 : f32 to vector<2x128xf32>
    %124 = arith.addf %123, %122 : vector<2x128xf32>
    %125 = arith.divf %123, %124 : vector<2x128xf32>
    %126 = vector.extract_strided_slice %125 {offsets = [0, 0], sizes = [2, 32], strides = [1, 1]} : vector<2x128xf32> to vector<2x32xf32>
    %127 = vector.extract_strided_slice %125 {offsets = [0, 32], sizes = [2, 32], strides = [1, 1]} : vector<2x128xf32> to vector<2x32xf32>
    %128 = vector.extract_strided_slice %125 {offsets = [0, 96], sizes = [2, 32], strides = [1, 1]} : vector<2x128xf32> to vector<2x32xf32>
    %129 = vector.extract_strided_slice %120 {offsets = [0, 64], sizes = [2, 32], strides = [1, 1]} : vector<2x128xf32> to vector<2x32xf32>
    %130 = math.tanh %129 : vector<2x32xf32>
    %131 = arith.mulf %127, %115 : vector<2x32xf32>
    %132 = arith.mulf %126, %130 : vector<2x32xf32>
    %133 = arith.addf %131, %132 : vector<2x32xf32>
    %134 = math.tanh %133 : vector<2x32xf32>
    %135 = arith.mulf %128, %134 : vector<2x32xf32>
    %c14 = arith.constant 14 : index
    %c0_33 = arith.constant 0 : index
    %136 = vector.load %arg7[%c14, %c0_33] : memref<16x128xf32, #tpu.memory_space<vmem>>, vector<2x128xf32>
    %cst_34 = arith.constant dense<0.000000e+00> : vector<2x128xf32>
    %137 = tpu.matmul %135, %7, %cst_34 {dimension_numbers = #tpu.dot_dimension_numbers<[1], [0], [0], [1], [0, 0, 1, 1], [], []>} : vector<2x32xf32>, vector<32x128xf32>, vector<2x128xf32> -> vector<2x128xf32>
    %138 = arith.addf %136, %137 : vector<2x128xf32>
    %139 = arith.negf %138 : vector<2x128xf32>
    %140 = math.exp %139 : vector<2x128xf32>
    %cst_35 = arith.constant 1.000000e+00 : f32
    %141 = vector.broadcast %cst_35 : f32 to vector<2x128xf32>
    %142 = arith.addf %141, %140 : vector<2x128xf32>
    %143 = arith.divf %141, %142 : vector<2x128xf32>
    %144 = vector.extract_strided_slice %143 {offsets = [0, 0], sizes = [2, 32], strides = [1, 1]} : vector<2x128xf32> to vector<2x32xf32>
    %145 = vector.extract_strided_slice %143 {offsets = [0, 32], sizes = [2, 32], strides = [1, 1]} : vector<2x128xf32> to vector<2x32xf32>
    %146 = vector.extract_strided_slice %143 {offsets = [0, 96], sizes = [2, 32], strides = [1, 1]} : vector<2x128xf32> to vector<2x32xf32>
    %147 = vector.extract_strided_slice %138 {offsets = [0, 64], sizes = [2, 32], strides = [1, 1]} : vector<2x128xf32> to vector<2x32xf32>
    %148 = math.tanh %147 : vector<2x32xf32>
    %149 = arith.mulf %145, %133 : vector<2x32xf32>
    %150 = arith.mulf %144, %148 : vector<2x32xf32>
    %151 = arith.addf %149, %150 : vector<2x32xf32>
    %152 = math.tanh %151 : vector<2x32xf32>
    %153 = arith.mulf %146, %152 : vector<2x32xf32>
    %c0_36 = arith.constant 0 : index
    %c0_37 = arith.constant 0 : index
    %154 = vector.load %arg4[%c0_36, %c0_37] : memref<32x16xf32, #tpu.memory_space<vmem>>, vector<32x16xf32>
    %cst_38 = arith.constant dense<0.000000e+00> : vector<2x16xf32>
    %155 = tpu.matmul %153, %154, %cst_38 {dimension_numbers = #tpu.dot_dimension_numbers<[1], [0], [0], [1], [0, 0, 1, 1], [], []>} : vector<2x32xf32>, vector<32x16xf32>, vector<2x16xf32> -> vector<2x16xf32>
    %c0_39 = arith.constant 0 : index
    %c0_40 = arith.constant 0 : index
    %156 = vector.load %arg5[%c0_39, %c0_40] : memref<2x16xf32, #tpu.memory_space<vmem>>, vector<2x16xf32>
    %157 = arith.addf %155, %156 : vector<2x16xf32>
    %c0_41 = arith.constant 0 : index
    %c0_42 = arith.constant 0 : index
    %158 = vector.load %arg6[%c0_41, %c0_42] : memref<2x16xf32, #tpu.memory_space<vmem>>, vector<2x16xf32>
    tpu.vector_store %arg6[%c0_41, %c0_42], %157 {strides = array<i32>} : memref<2x16xf32, #tpu.memory_space<vmem>>, vector<2x16xf32>,
    return
  }
}

</mosaic_0001>

<llo_original>
// kernel: lstm_x1_x2_forward.1
$region0: #{lstm_x1_x2_forward.1}
  #allocation0 [shape = 'u32[]', space=smem, size = 0x4, offset = 0x4, fixed_abs, tag = 'smem constant byte address 0x4 - core index']
  #allocation1 [shape = 'u32[144,128]{1,0:T(1,128)}', space=vmem, size = 0x12000, scoped, tag = 'internal scratch']
  #allocation2 [shape = 'f32[16,128]{1,0:T(8,128)}', space=vmem, size = 0x2000, scoped, tag = 'scratch operand']
  %s0 = inlined_call_operand.vmem [shape: f32[16,4], index: 0, kind: input, shape index: {}]
  %s1 = inlined_call_operand.vmem [shape: f32[4,128], index: 1, kind: input, shape index: {}]
  %s2 = inlined_call_operand.vmem [shape: f32[32,128], index: 2, kind: input, shape index: {}]
  %s3 = inlined_call_operand.vmem [shape: f32[1,128], index: 3, kind: input, shape index: {}]
  %s4 = inlined_call_operand.vmem [shape: f32[32,16], index: 4, kind: input, shape index: {}]
  %s5 = inlined_call_operand.vmem [shape: f32[2,16], index: 5, kind: input, shape index: {}]
  %s6 = inlined_call_operand.hbm [shape: f32[2,16], index: 6, kind: output, shape index: {}]
  %s7 = sld [smem:[#allocation0]]
  $region34: #{lstm_x1_x2_forward.1} parent=0
    _
  %s9 = ssub.s32 1, %s7
  %s10 = scalar_select 0, %s9, %s7
  $region1: #{lstm_x1_x2_forward.1} parent=0
    #allocation3 [shape = 'u8[1024]{0}', space=vmem, size = 0x400, scoped, tag = 'output window, operand 0, single buffered']
    #allocation4 [shape = 's32[1]{0}', space=sflag, size = 0x4, scoped, tag = 'scoped memory for lstm_x1_x2_forward.1']
    %11 = vsyncpa [#allocation4], 0
    // Predicated region
    $region2: #{lstm_x1_x2_forward.1} parent=1 // pred_check
      _
    $region3: #{lstm_x1_x2_forward.1} parent=1 // pred_check_branch
      %13 = sbr.rel (0) target = $region5
    $region4: #{lstm_x1_x2_forward.1} parent=1 // pred_region
      _
    $region5: #{lstm_x1_x2_forward.1} parent=1 // pred_fallthru
      _
    // Predicated region
    $region6: #{lstm_x1_x2_forward.1} parent=1 // pred_check
      _
    $region7: #{lstm_x1_x2_forward.1} parent=1 // pred_check_branch
      %15 = sbr.rel (0) target = $region9
    $region8: #{lstm_x1_x2_forward.1} parent=1 // pred_region
      _
    $region9: #{lstm_x1_x2_forward.1} parent=1 // pred_fallthru
      _
    // Predicated region
    $region10: #{lstm_x1_x2_forward.1} parent=1 // pred_check
      _
    $region11: #{lstm_x1_x2_forward.1} parent=1 // pred_check_branch
      %17 = sbr.rel (0) target = $region13
    $region12: #{lstm_x1_x2_forward.1} parent=1 // pred_region
      _
    $region13: #{lstm_x1_x2_forward.1} parent=1 // pred_fallthru
      _
    // Predicated region
    $region14: #{lstm_x1_x2_forward.1} parent=1 // pred_check
      _
    $region15: #{lstm_x1_x2_forward.1} parent=1 // pred_check_branch
      %19 = sbr.rel (0) target = $region17
    $region16: #{lstm_x1_x2_forward.1} parent=1 // pred_region
      _
    $region17: #{lstm_x1_x2_forward.1} parent=1 // pred_fallthru
      _
    // Predicated region
    $region18: #{lstm_x1_x2_forward.1} parent=1 // pred_check
      _
    $region19: #{lstm_x1_x2_forward.1} parent=1 // pred_check_branch
      %21 = sbr.rel (0) target = $region21
    $region20: #{lstm_x1_x2_forward.1} parent=1 // pred_region
      _
    $region21: #{lstm_x1_x2_forward.1} parent=1 // pred_fallthru
      _
    // Predicated region
    $region22: #{lstm_x1_x2_forward.1} parent=1 // pred_check
      _
    $region23: #{lstm_x1_x2_forward.1} parent=1 // pred_check_branch
      %23 = sbr.rel (0) target = $region25
    $region24: #{lstm_x1_x2_forward.1} parent=1 // pred_region
      _
    $region25: #{lstm_x1_x2_forward.1} parent=1 // pred_fallthru
      _
    %v24 = vld [vmem:[%s0] sm:$0xff]
    %v25 = vld [vmem:[%s0 + $0x8] sm:$0xff]
    %v26 = vld [vmem:[%s1] sm:$0xf]
    %v27 = vld [vmem:[%s3] sm:$0x1]
    %v29 = vlaneseq
    %v30 = vshrl.u32 %v29, 7
    %v31 = vsub.s32 0, %v30
    %v32 = vrot.slane %v27, %v31
    %vm34 = vcmask 31744
    %v36 = vsel %vm34, %v24, 0
    %v39 = vsel %vm34, %v25, 0
    %vm41 = vcmask 1043456
    %v43 = vsel %vm41, %v26, 0
    %45 = vmatprep.subr.mxu0 0.0
    %46 = vmatpush1.msra.mxu0 %v43
    %47 = vmatprep.subr.mxu0 0.0
    %48 = vmatpush1.msra.mxu0 0.0
    %49 = vmatprep.subr.mxu0 0.0
    %50 = vmatpush1.msra.mxu0 0.0
    %51 = vmatprep.subr.mxu0 0.0
    %52 = vmatpush1.msra.mxu0 0.0
    %53 = vmatprep.subr.mxu0 0.0
    %54 = vmatpush1.msra.mxu0 0.0
    %55 = vmatprep.subr.mxu0 0.0
    %56 = vmatpush1.msra.mxu0 0.0
    %57 = vmatprep.subr.mxu0 0.0
    %58 = vmatpush1.msra.mxu0 0.0
    %59 = vmatprep.subr.mxu0 0.0
    %60 = vmatpush1.msra.mxu0 0.0
    %61 = vmatprep.subr.mxu0 0.0
    %62 = vmatpush1.msra.mxu0 0.0
    %63 = vmatprep.subr.mxu0 0.0
    %64 = vmatpush1.msra.mxu0 0.0
    %65 = vmatprep.subr.mxu0 0.0
    %66 = vmatpush1.msra.mxu0 0.0
    %67 = vmatprep.subr.mxu0 0.0
    %68 = vmatpush1.msra.mxu0 0.0
    %69 = vmatprep.subr.mxu0 0.0
    %70 = vmatpush1.msra.mxu0 0.0
    %71 = vmatprep.subr.mxu0 0.0
    %72 = vmatpush1.msra.mxu0 0.0
    %73 = vmatprep.subr.mxu0 0.0
    %74 = vmatpush1.msra.mxu0 0.0
    %75 = vmatprep.subr.mxu0 0.0
    %76 = vmatpush1.msra.mxu0 0.0
    %77 = vmatprep.subr.mxu0 0.0
    %78 = vmatpush1.msra.mxu0 0.0
    %79 = vmatprep.subr.mxu0 0.0
    %80 = vmatpush1.msra.mxu0 0.0
    %81 = vmatprep.subr.mxu0 0.0
    %82 = vmatpush1.msra.mxu0 0.0
    %83 = vmatprep.subr.mxu0 0.0
    %84 = vmatpush1.msra.mxu0 0.0
    %85 = vmatprep.subr.mxu0 0.0
    %86 = vmatpush1.msra.mxu0 0.0
    %87 = vmatprep.subr.mxu0 0.0
    %88 = vmatpush1.msra.mxu0 0.0
    %89 = vmatprep.subr.mxu0 0.0
    %90 = vmatpush1.msra.mxu0 0.0
    %91 = vmatprep.subr.mxu0 0.0
    %92 = vmatpush1.msra.mxu0 0.0
    %93 = vmatprep.subr.mxu0 0.0
    %94 = vmatpush1.msra.mxu0 0.0
    %95 = vmatprep.subr.mxu0 0.0
    %96 = vmatpush1.msra.mxu0 0.0
    %97 = vmatprep.subr.mxu0 0.0
    %98 = vmatpush1.msra.mxu0 0.0
    %99 = vmatprep.subr.mxu0 0.0
    %100 = vmatpush1.msra.mxu0 0.0
    %101 = vmatprep.subr.mxu0 0.0
    %102 = vmatpush1.msra.mxu0 0.0
    %103 = vmatprep.subr.mxu0 0.0
    %104 = vmatpush1.msra.mxu0 0.0
    %105 = vmatprep.subr.mxu0 0.0
    %106 = vmatpush1.msra.mxu0 0.0
    %107 = vmatprep.subr.mxu0 0.0
    %108 = vmatpush1.msra.mxu0 0.0
    %109 = vmatprep.mubr.f32.mxu0 0.0
    %110 = vmatmul.mubr.f32.gmra.mrb[0].mxu0 %v36
    %v111 = vpop.f32.mrb[0].mxu0
    %v112 = vadd.f32 %v32, %v111
    %v113 = vpop.f32.mrb[0].mxu0
    %114 = vmatprep.mubr.f32.mxu0 0.0
    %115 = vmatmul.mubr.f32.gmra.mrb[0].mxu0 %v39
    %v116 = vpop.f32.mrb[0].mxu0
    %v117 = vadd.f32 %v32, %v116
    %v118 = vpop.f32.mrb[0].mxu0
    %119 = vdwg.mxu0
    %120 = vst [vmem:[#allocation2] sm:$0xff] %v112
    %121 = vst [vmem:[#allocation2 + $0x8] sm:$0xff] %v117
    %v122 = vld [vmem:[%s2] sm:$0xff]
    %v123 = vld [vmem:[%s2 + $0x8] sm:$0xff]
    %v124 = vld [vmem:[%s2 + $0x10] sm:$0xff]
    %v125 = vld [vmem:[%s2 + $0x18] sm:$0xff]
    %v126 = vld [vmem:[#allocation2] sm:$0x3]
    %vm127 = vcmask 261120
    %v129 = vsel %vm127, 0.0, 0
    %131 = vmatprep.subr.mxu0 0.0
    %132 = vmatpush1.msra.mxu0 %v122
    %133 = vmatprep.subr.mxu0 0.0
    %134 = vmatpush1.msra.mxu0 %v123
    %135 = vmatprep.subr.mxu0 0.0
    %136 = vmatpush1.msra.mxu0 %v124
    %137 = vmatprep.subr.mxu0 0.0
    %138 = vmatpush1.msra.mxu0 %v125
    %139 = vmatprep.subr.mxu0 0.0
    %140 = vmatpush1.msra.mxu0 0.0
    %141 = vmatprep.subr.mxu0 0.0
    %142 = vmatpush1.msra.mxu0 0.0
    %143 = vmatprep.subr.mxu0 0.0
    %144 = vmatpush1.msra.mxu0 0.0
    %145 = vmatprep.subr.mxu0 0.0
    %146 = vmatpush1.msra.mxu0 0.0
    %147 = vmatprep.subr.mxu0 0.0
    %148 = vmatpush1.msra.mxu0 0.0
    %149 = vmatprep.subr.mxu0 0.0
    %150 = vmatpush1.msra.mxu0 0.0
    %151 = vmatprep.subr.mxu0 0.0
    %152 = vmatpush1.msra.mxu0 0.0
    %153 = vmatprep.subr.mxu0 0.0
    %154 = vmatpush1.msra.mxu0 0.0
    %155 = vmatprep.subr.mxu0 0.0
    %156 = vmatpush1.msra.mxu0 0.0
    %157 = vmatprep.subr.mxu0 0.0
    %158 = vmatpush1.msra.mxu0 0.0
    %159 = vmatprep.subr.mxu0 0.0
    %160 = vmatpush1.msra.mxu0 0.0
    %161 = vmatprep.subr.mxu0 0.0
    %162 = vmatpush1.msra.mxu0 0.0
    %163 = vmatprep.subr.mxu0 0.0
    %164 = vmatpush1.msra.mxu0 0.0
    %165 = vmatprep.subr.mxu0 0.0
    %166 = vmatpush1.msra.mxu0 0.0
    %167 = vmatprep.subr.mxu0 0.0
    %168 = vmatpush1.msra.mxu0 0.0
    %169 = vmatprep.subr.mxu0 0.0
    %170 = vmatpush1.msra.mxu0 0.0
    %171 = vmatprep.subr.mxu0 0.0
    %172 = vmatpush1.msra.mxu0 0.0
    %173 = vmatprep.subr.mxu0 0.0
    %174 = vmatpush1.msra.mxu0 0.0
    %175 = vmatprep.subr.mxu0 0.0
    %176 = vmatpush1.msra.mxu0 0.0
    %177 = vmatprep.subr.mxu0 0.0
    %178 = vmatpush1.msra.mxu0 0.0
    %179 = vmatprep.subr.mxu0 0.0
    %180 = vmatpush1.msra.mxu0 0.0
    %181 = vmatprep.subr.mxu0 0.0
    %182 = vmatpush1.msra.mxu0 0.0
    %183 = vmatprep.subr.mxu0 0.0
    %184 = vmatpush1.msra.mxu0 0.0
    %185 = vmatprep.subr.mxu0 0.0
    %186 = vmatpush1.msra.mxu0 0.0
    %187 = vmatprep.subr.mxu0 0.0
    %188 = vmatpush1.msra.mxu0 0.0
    %189 = vmatprep.subr.mxu0 0.0
    %190 = vmatpush1.msra.mxu0 0.0
    %191 = vmatprep.subr.mxu0 0.0
    %192 = vmatpush1.msra.mxu0 0.0
    %193 = vmatprep.subr.mxu0 0.0
    %194 = vmatpush1.msra.mxu0 0.0
    %195 = vmatprep.mubr.f32.mxu0 0.0
    %196 = vmatmul.mubr.f32.gmra.mrb[0].mxu0 %v129
    %v197 = vpop.f32.mrb[0].mxu0
    %v198 = vadd.f32 0.0, %v197
    %v199 = vpop.f32.mrb[0].mxu0
    %200 = vdwg.mxu0
    %v201 = vadd.f32 %v126, %v198
    %v202 = vxor.u32 %v201, 2147483648
    %v203 = vmul.f32 %v202, 1.442695
    %v204 = vpow.pop %v203
    %v205 = vadd.f32 %v204, 1.0
    %v206 = vrcp.pop %v205
    %v207 = vmul.f32 1.0, %v206
    %v208 = vtanh.pop %v201
    %v209 = vmul.f32 %v207, 0.0
    %211 = vrot.lane.b32.xlu0 %v208, 64
    %v212 = vpop.permute.xlu0 %211
    %v214 = vmul.f32 %v207, %v212
    %216 = vrot.lane.b32.xlu0 %v214, 32
    %v217 = vpop.permute.xlu0 %216
    %v219 = vadd.f32 %v209, %v217
    %v220 = vtanh.pop %v219
    %222 = vrot.lane.b32.xlu0 %v220, 64
    %v223 = vpop.permute.xlu0 %222
    %v225 = vmul.f32 %v207, %v223
    %v226 = vld [vmem:[#allocation2 + $0x2] sm:$0x3]
    %228 = vrot.lane.b32.xlu0 %v225, 32
    %v229 = vpop.permute.xlu0 %228
    %v230 = vsel %vm127, %v229, 0
    %232 = vmatprep.subr.mxu0 0.0
    %233 = vmatpush1.msra.mxu0 %v122
    %234 = vmatprep.subr.mxu0 0.0
    %235 = vmatpush1.msra.mxu0 %v123
    %236 = vmatprep.subr.mxu0 0.0
    %237 = vmatpush1.msra.mxu0 %v124
    %238 = vmatprep.subr.mxu0 0.0
    %239 = vmatpush1.msra.mxu0 %v125
    %240 = vmatprep.subr.mxu0 0.0
    %241 = vmatpush1.msra.mxu0 0.0
    %242 = vmatprep.subr.mxu0 0.0
    %243 = vmatpush1.msra.mxu0 0.0
    %244 = vmatprep.subr.mxu0 0.0
    %245 = vmatpush1.msra.mxu0 0.0
    %246 = vmatprep.subr.mxu0 0.0
    %247 = vmatpush1.msra.mxu0 0.0
    %248 = vmatprep.subr.mxu0 0.0
    %249 = vmatpush1.msra.mxu0 0.0
    %250 = vmatprep.subr.mxu0 0.0
    %251 = vmatpush1.msra.mxu0 0.0
    %252 = vmatprep.subr.mxu0 0.0
    %253 = vmatpush1.msra.mxu0 0.0
    %254 = vmatprep.subr.mxu0 0.0
    %255 = vmatpush1.msra.mxu0 0.0
    %256 = vmatprep.subr.mxu0 0.0
    %257 = vmatpush1.msra.mxu0 0.0
    %258 = vmatprep.subr.mxu0 0.0
    %259 = vmatpush1.msra.mxu0 0.0
    %260 = vmatprep.subr.mxu0 0.0
    %261 = vmatpush1.msra.mxu0 0.0
    %262 = vmatprep.subr.mxu0 0.0
    %263 = vmatpush1.msra.mxu0 0.0
    %264 = vmatprep.subr.mxu0 0.0
    %265 = vmatpush1.msra.mxu0 0.0
    %266 = vmatprep.subr.mxu0 0.0
    %267 = vmatpush1.msra.mxu0 0.0
    %268 = vmatprep.subr.mxu0 0.0
    %269 = vmatpush1.msra.mxu0 0.0
    %270 = vmatprep.subr.mxu0 0.0
    %271 = vmatpush1.msra.mxu0 0.0
    %272 = vmatprep.subr.mxu0 0.0
    %273 = vmatpush1.msra.mxu0 0.0
    %274 = vmatprep.subr.mxu0 0.0
    %275 = vmatpush1.msra.mxu0 0.0
    %276 = vmatprep.subr.mxu0 0.0
    %277 = vmatpush1.msra.mxu0 0.0
    %278 = vmatprep.subr.mxu0 0.0
    %279 = vmatpush1.msra.mxu0 0.0
    %280 = vmatprep.subr.mxu0 0.0
    %281 = vmatpush1.msra.mxu0 0.0
    %282 = vmatprep.subr.mxu0 0.0
    %283 = vmatpush1.msra.mxu0 0.0
    %284 = vmatprep.subr.mxu0 0.0
    %285 = vmatpush1.msra.mxu0 0.0
    %286 = vmatprep.subr.mxu0 0.0
    %287 = vmatpush1.msra.mxu0 0.0
    %288 = vmatprep.subr.mxu0 0.0
    %289 = vmatpush1.msra.mxu0 0.0
    %290 = vmatprep.subr.mxu0 0.0
    %291 = vmatpush1.msra.mxu0 0.0
    %292 = vmatprep.subr.mxu0 0.0
    %293 = vmatpush1.msra.mxu0 0.0
    %294 = vmatprep.subr.mxu0 0.0
    %295 = vmatpush1.msra.mxu0 0.0
    %296 = vmatprep.mubr.f32.mxu0 0.0
    %297 = vmatmul.mubr.f32.gmra.mrb[0].mxu0 %v230
    %v298 = vpop.f32.mrb[0].mxu0
    %v299 = vadd.f32 0.0, %v298
    %v300 = vpop.f32.mrb[0].mxu0
    %301 = vdwg.mxu0
    %v302 = vadd.f32 %v226, %v299
    %v303 = vxor.u32 %v302, 2147483648
    %v304 = vmul.f32 %v303, 1.442695
    %v305 = vpow.pop %v304
    %v306 = vadd.f32 %v305, 1.0
    %v307 = vrcp.pop %v306
    %v308 = vmul.f32 1.0, %v307
    %v309 = vtanh.pop %v302
    %v310 = vmul.f32 %v308, %v219
    %312 = vrot.lane.b32.xlu0 %v309, 64
    %v313 = vpop.permute.xlu0 %312
    %v315 = vmul.f32 %v308, %v313
    %317 = vrot.lane.b32.xlu0 %v315, 32
    %v318 = vpop.permute.xlu0 %317
    %v320 = vadd.f32 %v310, %v318
    %v321 = vtanh.pop %v320
    %323 = vrot.lane.b32.xlu0 %v321, 64
    %v324 = vpop.permute.xlu0 %323
    %v326 = vmul.f32 %v308, %v324
    %v327 = vld [vmem:[#allocation2 + $0x4] sm:$0x3]
    %329 = vrot.lane.b32.xlu0 %v326, 32
    %v330 = vpop.permute.xlu0 %329
    %v331 = vsel %vm127, %v330, 0
    %333 = vmatprep.subr.mxu0 0.0
    %334 = vmatpush1.msra.mxu0 %v122
    %335 = vmatprep.subr.mxu0 0.0
    %336 = vmatpush1.msra.mxu0 %v123
    %337 = vmatprep.subr.mxu0 0.0
    %338 = vmatpush1.msra.mxu0 %v124
    %339 = vmatprep.subr.mxu0 0.0
    %340 = vmatpush1.msra.mxu0 %v125
    %341 = vmatprep.subr.mxu0 0.0
    %342 = vmatpush1.msra.mxu0 0.0
    %343 = vmatprep.subr.mxu0 0.0
    %344 = vmatpush1.msra.mxu0 0.0
    %345 = vmatprep.subr.mxu0 0.0
    %346 = vmatpush1.msra.mxu0 0.0
    %347 = vmatprep.subr.mxu0 0.0
    %348 = vmatpush1.msra.mxu0 0.0
    %349 = vmatprep.subr.mxu0 0.0
    %350 = vmatpush1.msra.mxu0 0.0
    %351 = vmatprep.subr.mxu0 0.0
    %352 = vmatpush1.msra.mxu0 0.0
    %353 = vmatprep.subr.mxu0 0.0
    %354 = vmatpush1.msra.mxu0 0.0
    %355 = vmatprep.subr.mxu0 0.0
    %356 = vmatpush1.msra.mxu0 0.0
    %357 = vmatprep.subr.mxu0 0.0
    %358 = vmatpush1.msra.mxu0 0.0
    %359 = vmatprep.subr.mxu0 0.0
    %360 = vmatpush1.msra.mxu0 0.0
    %361 = vmatprep.subr.mxu0 0.0
    %362 = vmatpush1.msra.mxu0 0.0
    %363 = vmatprep.subr.mxu0 0.0
    %364 = vmatpush1.msra.mxu0 0.0
    %365 = vmatprep.subr.mxu0 0.0
    %366 = vmatpush1.msra.mxu0 0.0
    %367 = vmatprep.subr.mxu0 0.0
    %368 = vmatpush1.msra.mxu0 0.0
    %369 = vmatprep.subr.mxu0 0.0
    %370 = vmatpush1.msra.mxu0 0.0
    %371 = vmatprep.subr.mxu0 0.0
    %372 = vmatpush1.msra.mxu0 0.0
    %373 = vmatprep.subr.mxu0 0.0
    %374 = vmatpush1.msra.mxu0 0.0
    %375 = vmatprep.subr.mxu0 0.0
    %376 = vmatpush1.msra.mxu0 0.0
    %377 = vmatprep.subr.mxu0 0.0
    %378 = vmatpush1.msra.mxu0 0.0
    %379 = vmatprep.subr.mxu0 0.0
    %380 = vmatpush1.msra.mxu0 0.0
    %381 = vmatprep.subr.mxu0 0.0
    %382 = vmatpush1.msra.mxu0 0.0
    %383 = vmatprep.subr.mxu0 0.0
    %384 = vmatpush1.msra.mxu0 0.0
    %385 = vmatprep.subr.mxu0 0.0
    %386 = vmatpush1.msra.mxu0 0.0
    %387 = vmatprep.subr.mxu0 0.0
    %388 = vmatpush1.msra.mxu0 0.0
    %389 = vmatprep.subr.mxu0 0.0
    %390 = vmatpush1.msra.mxu0 0.0
    %391 = vmatprep.subr.mxu0 0.0
    %392 = vmatpush1.msra.mxu0 0.0
    %393 = vmatprep.subr.mxu0 0.0
    %394 = vmatpush1.msra.mxu0 0.0
    %395 = vmatprep.subr.mxu0 0.0
    %396 = vmatpush1.msra.mxu0 0.0
    %397 = vmatprep.mubr.f32.mxu0 0.0
    %398 = vmatmul.mubr.f32.gmra.mrb[0].mxu0 %v331
    %v399 = vpop.f32.mrb[0].mxu0
    %v400 = vadd.f32 0.0, %v399
    %v401 = vpop.f32.mrb[0].mxu0
    %402 = vdwg.mxu0
    %v403 = vadd.f32 %v327, %v400
    %v404 = vxor.u32 %v403, 2147483648
    %v405 = vmul.f32 %v404, 1.442695
    %v406 = vpow.pop %v405
    %v407 = vadd.f32 %v406, 1.0
    %v408 = vrcp.pop %v407
    %v409 = vmul.f32 1.0, %v408
    %v410 = vtanh.pop %v403
    %v411 = vmul.f32 %v409, %v320
    %413 = vrot.lane.b32.xlu0 %v410, 64
    %v414 = vpop.permute.xlu0 %413
    %v416 = vmul.f32 %v409, %v414
    %418 = vrot.lane.b32.xlu0 %v416, 32
    %v419 = vpop.permute.xlu0 %418
    %v421 = vadd.f32 %v411, %v419
    %v422 = vtanh.pop %v421
    %424 = vrot.lane.b32.xlu0 %v422, 64
    %v425 = vpop.permute.xlu0 %424
    %v427 = vmul.f32 %v409, %v425
    %v428 = vld [vmem:[#allocation2 + $0x6] sm:$0x3]
    %430 = vrot.lane.b32.xlu0 %v427, 32
    %v431 = vpop.permute.xlu0 %430
    %v432 = vsel %vm127, %v431, 0
    %434 = vmatprep.subr.mxu0 0.0
    %435 = vmatpush1.msra.mxu0 %v122
    %436 = vmatprep.subr.mxu0 0.0
    %437 = vmatpush1.msra.mxu0 %v123
    %438 = vmatprep.subr.mxu0 0.0
    %439 = vmatpush1.msra.mxu0 %v124
    %440 = vmatprep.subr.mxu0 0.0
    %441 = vmatpush1.msra.mxu0 %v125
    %442 = vmatprep.subr.mxu0 0.0
    %443 = vmatpush1.msra.mxu0 0.0
    %444 = vmatprep.subr.mxu0 0.0
    %445 = vmatpush1.msra.mxu0 0.0
    %446 = vmatprep.subr.mxu0 0.0
    %447 = vmatpush1.msra.mxu0 0.0
    %448 = vmatprep.subr.mxu0 0.0
    %449 = vmatpush1.msra.mxu0 0.0
    %450 = vmatprep.subr.mxu0 0.0
    %451 = vmatpush1.msra.mxu0 0.0
    %452 = vmatprep.subr.mxu0 0.0
    %453 = vmatpush1.msra.mxu0 0.0
    %454 = vmatprep.subr.mxu0 0.0
    %455 = vmatpush1.msra.mxu0 0.0
    %456 = vmatprep.subr.mxu0 0.0
    %457 = vmatpush1.msra.mxu0 0.0
    %458 = vmatprep.subr.mxu0 0.0
    %459 = vmatpush1.msra.mxu0 0.0
    %460 = vmatprep.subr.mxu0 0.0
    %461 = vmatpush1.msra.mxu0 0.0
    %462 = vmatprep.subr.mxu0 0.0
    %463 = vmatpush1.msra.mxu0 0.0
    %464 = vmatprep.subr.mxu0 0.0
    %465 = vmatpush1.msra.mxu0 0.0
    %466 = vmatprep.subr.mxu0 0.0
    %467 = vmatpush1.msra.mxu0 0.0
    %468 = vmatprep.subr.mxu0 0.0
    %469 = vmatpush1.msra.mxu0 0.0
    %470 = vmatprep.subr.mxu0 0.0
    %471 = vmatpush1.msra.mxu0 0.0
    %472 = vmatprep.subr.mxu0 0.0
    %473 = vmatpush1.msra.mxu0 0.0
    %474 = vmatprep.subr.mxu0 0.0
    %475 = vmatpush1.msra.mxu0 0.0
    %476 = vmatprep.subr.mxu0 0.0
    %477 = vmatpush1.msra.mxu0 0.0
    %478 = vmatprep.subr.mxu0 0.0
    %479 = vmatpush1.msra.mxu0 0.0
    %480 = vmatprep.subr.mxu0 0.0
    %481 = vmatpush1.msra.mxu0 0.0
    %482 = vmatprep.subr.mxu0 0.0
    %483 = vmatpush1.msra.mxu0 0.0
    %484 = vmatprep.subr.mxu0 0.0
    %485 = vmatpush1.msra.mxu0 0.0
    %486 = vmatprep.subr.mxu0 0.0
    %487 = vmatpush1.msra.mxu0 0.0
    %488 = vmatprep.subr.mxu0 0.0
    %489 = vmatpush1.msra.mxu0 0.0
    %490 = vmatprep.subr.mxu0 0.0
    %491 = vmatpush1.msra.mxu0 0.0
    %492 = vmatprep.subr.mxu0 0.0
    %493 = vmatpush1.msra.mxu0 0.0
    %494 = vmatprep.subr.mxu0 0.0
    %495 = vmatpush1.msra.mxu0 0.0
    %496 = vmatprep.subr.mxu0 0.0
    %497 = vmatpush1.msra.mxu0 0.0
    %498 = vmatprep.mubr.f32.mxu0 0.0
    %499 = vmatmul.mubr.f32.gmra.mrb[0].mxu0 %v432
    %v500 = vpop.f32.mrb[0].mxu0
    %v501 = vadd.f32 0.0, %v500
    %v502 = vpop.f32.mrb[0].mxu0
    %503 = vdwg.mxu0
    %v504 = vadd.f32 %v428, %v501
    %v505 = vxor.u32 %v504, 2147483648
    %v506 = vmul.f32 %v505, 1.442695
    %v507 = vpow.pop %v506
    %v508 = vadd.f32 %v507, 1.0
    %v509 = vrcp.pop %v508
    %v510 = vmul.f32 1.0, %v509
    %v511 = vtanh.pop %v504
    %v512 = vmul.f32 %v510, %v421
    %514 = vrot.lane.b32.xlu0 %v511, 64
    %v515 = vpop.permute.xlu0 %514
    %v517 = vmul.f32 %v510, %v515
    %519 = vrot.lane.b32.xlu0 %v517, 32
    %v520 = vpop.permute.xlu0 %519
    %v522 = vadd.f32 %v512, %v520
    %v523 = vtanh.pop %v522
    %525 = vrot.lane.b32.xlu0 %v523, 64
    %v526 = vpop.permute.xlu0 %525
    %v528 = vmul.f32 %v510, %v526
    %v529 = vld [vmem:[#allocation2 + $0x8] sm:$0x3]
    %531 = vrot.lane.b32.xlu0 %v528, 32
    %v532 = vpop.permute.xlu0 %531
    %v533 = vsel %vm127, %v532, 0
    %535 = vmatprep.subr.mxu0 0.0
    %536 = vmatpush1.msra.mxu0 %v122
    %537 = vmatprep.subr.mxu0 0.0
    %538 = vmatpush1.msra.mxu0 %v123
    %539 = vmatprep.subr.mxu0 0.0
    %540 = vmatpush1.msra.mxu0 %v124
    %541 = vmatprep.subr.mxu0 0.0
    %542 = vmatpush1.msra.mxu0 %v125
    %543 = vmatprep.subr.mxu0 0.0
    %544 = vmatpush1.msra.mxu0 0.0
    %545 = vmatprep.subr.mxu0 0.0
    %546 = vmatpush1.msra.mxu0 0.0
    %547 = vmatprep.subr.mxu0 0.0
    %548 = vmatpush1.msra.mxu0 0.0
    %549 = vmatprep.subr.mxu0 0.0
    %550 = vmatpush1.msra.mxu0 0.0
    %551 = vmatprep.subr.mxu0 0.0
    %552 = vmatpush1.msra.mxu0 0.0
    %553 = vmatprep.subr.mxu0 0.0
    %554 = vmatpush1.msra.mxu0 0.0
    %555 = vmatprep.subr.mxu0 0.0
    %556 = vmatpush1.msra.mxu0 0.0
    %557 = vmatprep.subr.mxu0 0.0
    %558 = vmatpush1.msra.mxu0 0.0
    %559 = vmatprep.subr.mxu0 0.0
    %560 = vmatpush1.msra.mxu0 0.0
    %561 = vmatprep.subr.mxu0 0.0
    %562 = vmatpush1.msra.mxu0 0.0
    %563 = vmatprep.subr.mxu0 0.0
    %564 = vmatpush1.msra.mxu0 0.0
    %565 = vmatprep.subr.mxu0 0.0
    %566 = vmatpush1.msra.mxu0 0.0
    %567 = vmatprep.subr.mxu0 0.0
    %568 = vmatpush1.msra.mxu0 0.0
    %569 = vmatprep.subr.mxu0 0.0
    %570 = vmatpush1.msra.mxu0 0.0
    %571 = vmatprep.subr.mxu0 0.0
    %572 = vmatpush1.msra.mxu0 0.0
    %573 = vmatprep.subr.mxu0 0.0
    %574 = vmatpush1.msra.mxu0 0.0
    %575 = vmatprep.subr.mxu0 0.0
    %576 = vmatpush1.msra.mxu0 0.0
    %577 = vmatprep.subr.mxu0 0.0
    %578 = vmatpush1.msra.mxu0 0.0
    %579 = vmatprep.subr.mxu0 0.0
    %580 = vmatpush1.msra.mxu0 0.0
    %581 = vmatprep.subr.mxu0 0.0
    %582 = vmatpush1.msra.mxu0 0.0
    %583 = vmatprep.subr.mxu0 0.0
    %584 = vmatpush1.msra.mxu0 0.0
    %585 = vmatprep.subr.mxu0 0.0
    %586 = vmatpush1.msra.mxu0 0.0
    %587 = vmatprep.subr.mxu0 0.0
    %588 = vmatpush1.msra.mxu0 0.0
    %589 = vmatprep.subr.mxu0 0.0
    %590 = vmatpush1.msra.mxu0 0.0
    %591 = vmatprep.subr.mxu0 0.0
    %592 = vmatpush1.msra.mxu0 0.0
    %593 = vmatprep.subr.mxu0 0.0
    %594 = vmatpush1.msra.mxu0 0.0
    %595 = vmatprep.subr.mxu0 0.0
    %596 = vmatpush1.msra.mxu0 0.0
    %597 = vmatprep.subr.mxu0 0.0
    %598 = vmatpush1.msra.mxu0 0.0
    %599 = vmatprep.mubr.f32.mxu0 0.0
    %600 = vmatmul.mubr.f32.gmra.mrb[0].mxu0 %v533
    %v601 = vpop.f32.mrb[0].mxu0
    %v602 = vadd.f32 0.0, %v601
    %v603 = vpop.f32.mrb[0].mxu0
    %604 = vdwg.mxu0
    %v605 = vadd.f32 %v529, %v602
    %v606 = vxor.u32 %v605, 2147483648
    %v607 = vmul.f32 %v606, 1.442695
    %v608 = vpow.pop %v607
    %v609 = vadd.f32 %v608, 1.0
    %v610 = vrcp.pop %v609
    %v611 = vmul.f32 1.0, %v610
    %v612 = vtanh.pop %v605
    %v613 = vmul.f32 %v611, %v522
    %615 = vrot.lane.b32.xlu0 %v612, 64
    %v616 = vpop.permute.xlu0 %615
    %v618 = vmul.f32 %v611, %v616
    %620 = vrot.lane.b32.xlu0 %v618, 32
    %v621 = vpop.permute.xlu0 %620
    %v623 = vadd.f32 %v613, %v621
    %v624 = vtanh.pop %v623
    %626 = vrot.lane.b32.xlu0 %v624, 64
    %v627 = vpop.permute.xlu0 %626
    %v629 = vmul.f32 %v611, %v627
    %v630 = vld [vmem:[#allocation2 + $0xa] sm:$0x3]
    %632 = vrot.lane.b32.xlu0 %v629, 32
    %v633 = vpop.permute.xlu0 %632
    %v634 = vsel %vm127, %v633, 0
    %636 = vmatprep.subr.mxu0 0.0
    %637 = vmatpush1.msra.mxu0 %v122
    %638 = vmatprep.subr.mxu0 0.0
    %639 = vmatpush1.msra.mxu0 %v123
    %640 = vmatprep.subr.mxu0 0.0
    %641 = vmatpush1.msra.mxu0 %v124
    %642 = vmatprep.subr.mxu0 0.0
    %643 = vmatpush1.msra.mxu0 %v125
    %644 = vmatprep.subr.mxu0 0.0
    %645 = vmatpush1.msra.mxu0 0.0
    %646 = vmatprep.subr.mxu0 0.0
    %647 = vmatpush1.msra.mxu0 0.0
    %648 = vmatprep.subr.mxu0 0.0
    %649 = vmatpush1.msra.mxu0 0.0
    %650 = vmatprep.subr.mxu0 0.0
    %651 = vmatpush1.msra.mxu0 0.0
    %652 = vmatprep.subr.mxu0 0.0
    %653 = vmatpush1.msra.mxu0 0.0
    %654 = vmatprep.subr.mxu0 0.0
    %655 = vmatpush1.msra.mxu0 0.0
    %656 = vmatprep.subr.mxu0 0.0
    %657 = vmatpush1.msra.mxu0 0.0
    %658 = vmatprep.subr.mxu0 0.0
    %659 = vmatpush1.msra.mxu0 0.0
    %660 = vmatprep.subr.mxu0 0.0
    %661 = vmatpush1.msra.mxu0 0.0
    %662 = vmatprep.subr.mxu0 0.0
    %663 = vmatpush1.msra.mxu0 0.0
    %664 = vmatprep.subr.mxu0 0.0
    %665 = vmatpush1.msra.mxu0 0.0
    %666 = vmatprep.subr.mxu0 0.0
    %667 = vmatpush1.msra.mxu0 0.0
    %668 = vmatprep.subr.mxu0 0.0
    %669 = vmatpush1.msra.mxu0 0.0
    %670 = vmatprep.subr.mxu0 0.0
    %671 = vmatpush1.msra.mxu0 0.0
    %672 = vmatprep.subr.mxu0 0.0
    %673 = vmatpush1.msra.mxu0 0.0
    %674 = vmatprep.subr.mxu0 0.0
    %675 = vmatpush1.msra.mxu0 0.0
    %676 = vmatprep.subr.mxu0 0.0
    %677 = vmatpush1.msra.mxu0 0.0
    %678 = vmatprep.subr.mxu0 0.0
    %679 = vmatpush1.msra.mxu0 0.0
    %680 = vmatprep.subr.mxu0 0.0
    %681 = vmatpush1.msra.mxu0 0.0
    %682 = vmatprep.subr.mxu0 0.0
    %683 = vmatpush1.msra.mxu0 0.0
    %684 = vmatprep.subr.mxu0 0.0
    %685 = vmatpush1.msra.mxu0 0.0
    %686 = vmatprep.subr.mxu0 0.0
    %687 = vmatpush1.msra.mxu0 0.0
    %688 = vmatprep.subr.mxu0 0.0
    %689 = vmatpush1.msra.mxu0 0.0
    %690 = vmatprep.subr.mxu0 0.0
    %691 = vmatpush1.msra.mxu0 0.0
    %692 = vmatprep.subr.mxu0 0.0
    %693 = vmatpush1.msra.mxu0 0.0
    %694 = vmatprep.subr.mxu0 0.0
    %695 = vmatpush1.msra.mxu0 0.0
    %696 = vmatprep.subr.mxu0 0.0
    %697 = vmatpush1.msra.mxu0 0.0
    %698 = vmatprep.subr.mxu0 0.0
    %699 = vmatpush1.msra.mxu0 0.0
    %700 = vmatprep.mubr.f32.mxu0 0.0
    %701 = vmatmul.mubr.f32.gmra.mrb[0].mxu0 %v634
    %v702 = vpop.f32.mrb[0].mxu0
    %v703 = vadd.f32 0.0, %v702
    %v704 = vpop.f32.mrb[0].mxu0
    %705 = vdwg.mxu0
    %v706 = vadd.f32 %v630, %v703
    %v707 = vxor.u32 %v706, 2147483648
    %v708 = vmul.f32 %v707, 1.442695
    %v709 = vpow.pop %v708
    %v710 = vadd.f32 %v709, 1.0
    %v711 = vrcp.pop %v710
    %v712 = vmul.f32 1.0, %v711
    %v713 = vtanh.pop %v706
    %v714 = vmul.f32 %v712, %v623
    %716 = vrot.lane.b32.xlu0 %v713, 64
    %v717 = vpop.permute.xlu0 %716
    %v719 = vmul.f32 %v712, %v717
    %721 = vrot.lane.b32.xlu0 %v719, 32
    %v722 = vpop.permute.xlu0 %721
    %v724 = vadd.f32 %v714, %v722
    %v725 = vtanh.pop %v724
    %727 = vrot.lane.b32.xlu0 %v725, 64
    %v728 = vpop.permute.xlu0 %727
    %v730 = vmul.f32 %v712, %v728
    %v731 = vld [vmem:[#allocation2 + $0xc] sm:$0x3]
    %733 = vrot.lane.b32.xlu0 %v730, 32
    %v734 = vpop.permute.xlu0 %733
    %v735 = vsel %vm127, %v734, 0
    %737 = vmatprep.subr.mxu0 0.0
    %738 = vmatpush1.msra.mxu0 %v122
    %739 = vmatprep.subr.mxu0 0.0
    %740 = vmatpush1.msra.mxu0 %v123
    %741 = vmatprep.subr.mxu0 0.0
    %742 = vmatpush1.msra.mxu0 %v124
    %743 = vmatprep.subr.mxu0 0.0
    %744 = vmatpush1.msra.mxu0 %v125
    %745 = vmatprep.subr.mxu0 0.0
    %746 = vmatpush1.msra.mxu0 0.0
    %747 = vmatprep.subr.mxu0 0.0
    %748 = vmatpush1.msra.mxu0 0.0
    %749 = vmatprep.subr.mxu0 0.0
    %750 = vmatpush1.msra.mxu0 0.0
    %751 = vmatprep.subr.mxu0 0.0
    %752 = vmatpush1.msra.mxu0 0.0
    %753 = vmatprep.subr.mxu0 0.0
    %754 = vmatpush1.msra.mxu0 0.0
    %755 = vmatprep.subr.mxu0 0.0
    %756 = vmatpush1.msra.mxu0 0.0
    %757 = vmatprep.subr.mxu0 0.0
    %758 = vmatpush1.msra.mxu0 0.0
    %759 = vmatprep.subr.mxu0 0.0
    %760 = vmatpush1.msra.mxu0 0.0
    %761 = vmatprep.subr.mxu0 0.0
    %762 = vmatpush1.msra.mxu0 0.0
    %763 = vmatprep.subr.mxu0 0.0
    %764 = vmatpush1.msra.mxu0 0.0
    %765 = vmatprep.subr.mxu0 0.0
    %766 = vmatpush1.msra.mxu0 0.0
    %767 = vmatprep.subr.mxu0 0.0
    %768 = vmatpush1.msra.mxu0 0.0
    %769 = vmatprep.subr.mxu0 0.0
    %770 = vmatpush1.msra.mxu0 0.0
    %771 = vmatprep.subr.mxu0 0.0
    %772 = vmatpush1.msra.mxu0 0.0
    %773 = vmatprep.subr.mxu0 0.0
    %774 = vmatpush1.msra.mxu0 0.0
    %775 = vmatprep.subr.mxu0 0.0
    %776 = vmatpush1.msra.mxu0 0.0
    %777 = vmatprep.subr.mxu0 0.0
    %778 = vmatpush1.msra.mxu0 0.0
    %779 = vmatprep.subr.mxu0 0.0
    %780 = vmatpush1.msra.mxu0 0.0
    %781 = vmatprep.subr.mxu0 0.0
    %782 = vmatpush1.msra.mxu0 0.0
    %783 = vmatprep.subr.mxu0 0.0
    %784 = vmatpush1.msra.mxu0 0.0
    %785 = vmatprep.subr.mxu0 0.0
    %786 = vmatpush1.msra.mxu0 0.0
    %787 = vmatprep.subr.mxu0 0.0
    %788 = vmatpush1.msra.mxu0 0.0
    %789 = vmatprep.subr.mxu0 0.0
    %790 = vmatpush1.msra.mxu0 0.0
    %791 = vmatprep.subr.mxu0 0.0
    %792 = vmatpush1.msra.mxu0 0.0
    %793 = vmatprep.subr.mxu0 0.0
    %794 = vmatpush1.msra.mxu0 0.0
    %795 = vmatprep.subr.mxu0 0.0
    %796 = vmatpush1.msra.mxu0 0.0
    %797 = vmatprep.subr.mxu0 0.0
    %798 = vmatpush1.msra.mxu0 0.0
    %799 = vmatprep.subr.mxu0 0.0
    %800 = vmatpush1.msra.mxu0 0.0
    %801 = vmatprep.mubr.f32.mxu0 0.0
    %802 = vmatmul.mubr.f32.gmra.mrb[0].mxu0 %v735
    %v803 = vpop.f32.mrb[0].mxu0
    %v804 = vadd.f32 0.0, %v803
    %v805 = vpop.f32.mrb[0].mxu0
    %806 = vdwg.mxu0
    %v807 = vadd.f32 %v731, %v804
    %v808 = vxor.u32 %v807, 2147483648
    %v809 = vmul.f32 %v808, 1.442695
    %v810 = vpow.pop %v809
    %v811 = vadd.f32 %v810, 1.0
    %v812 = vrcp.pop %v811
    %v813 = vmul.f32 1.0, %v812
    %v814 = vtanh.pop %v807
    %v815 = vmul.f32 %v813, %v724
    %817 = vrot.lane.b32.xlu0 %v814, 64
    %v818 = vpop.permute.xlu0 %817
    %v820 = vmul.f32 %v813, %v818
    %822 = vrot.lane.b32.xlu0 %v820, 32
    %v823 = vpop.permute.xlu0 %822
    %v825 = vadd.f32 %v815, %v823
    %v826 = vtanh.pop %v825
    %828 = vrot.lane.b32.xlu0 %v826, 64
    %v829 = vpop.permute.xlu0 %828
    %v831 = vmul.f32 %v813, %v829
    %v832 = vld [vmem:[#allocation2 + $0xe] sm:$0x3]
    %834 = vrot.lane.b32.xlu0 %v831, 32
    %v835 = vpop.permute.xlu0 %834
    %v836 = vsel %vm127, %v835, 0
    %838 = vmatprep.subr.mxu0 0.0
    %839 = vmatpush1.msra.mxu0 %v122
    %840 = vmatprep.subr.mxu0 0.0
    %841 = vmatpush1.msra.mxu0 %v123
    %842 = vmatprep.subr.mxu0 0.0
    %843 = vmatpush1.msra.mxu0 %v124
    %844 = vmatprep.subr.mxu0 0.0
    %845 = vmatpush1.msra.mxu0 %v125
    %846 = vmatprep.subr.mxu0 0.0
    %847 = vmatpush1.msra.mxu0 0.0
    %848 = vmatprep.subr.mxu0 0.0
    %849 = vmatpush1.msra.mxu0 0.0
    %850 = vmatprep.subr.mxu0 0.0
    %851 = vmatpush1.msra.mxu0 0.0
    %852 = vmatprep.subr.mxu0 0.0
    %853 = vmatpush1.msra.mxu0 0.0
    %854 = vmatprep.subr.mxu0 0.0
    %855 = vmatpush1.msra.mxu0 0.0
    %856 = vmatprep.subr.mxu0 0.0
    %857 = vmatpush1.msra.mxu0 0.0
    %858 = vmatprep.subr.mxu0 0.0
    %859 = vmatpush1.msra.mxu0 0.0
    %860 = vmatprep.subr.mxu0 0.0
    %861 = vmatpush1.msra.mxu0 0.0
    %862 = vmatprep.subr.mxu0 0.0
    %863 = vmatpush1.msra.mxu0 0.0
    %864 = vmatprep.subr.mxu0 0.0
    %865 = vmatpush1.msra.mxu0 0.0
    %866 = vmatprep.subr.mxu0 0.0
    %867 = vmatpush1.msra.mxu0 0.0
    %868 = vmatprep.subr.mxu0 0.0
    %869 = vmatpush1.msra.mxu0 0.0
    %870 = vmatprep.subr.mxu0 0.0
    %871 = vmatpush1.msra.mxu0 0.0
    %872 = vmatprep.subr.mxu0 0.0
    %873 = vmatpush1.msra.mxu0 0.0
    %874 = vmatprep.subr.mxu0 0.0
    %875 = vmatpush1.msra.mxu0 0.0
    %876 = vmatprep.subr.mxu0 0.0
    %877 = vmatpush1.msra.mxu0 0.0
    %878 = vmatprep.subr.mxu0 0.0
    %879 = vmatpush1.msra.mxu0 0.0
    %880 = vmatprep.subr.mxu0 0.0
    %881 = vmatpush1.msra.mxu0 0.0
    %882 = vmatprep.subr.mxu0 0.0
    %883 = vmatpush1.msra.mxu0 0.0
    %884 = vmatprep.subr.mxu0 0.0
    %885 = vmatpush1.msra.mxu0 0.0
    %886 = vmatprep.subr.mxu0 0.0
    %887 = vmatpush1.msra.mxu0 0.0
    %888 = vmatprep.subr.mxu0 0.0
    %889 = vmatpush1.msra.mxu0 0.0
    %890 = vmatprep.subr.mxu0 0.0
    %891 = vmatpush1.msra.mxu0 0.0
    %892 = vmatprep.subr.mxu0 0.0
    %893 = vmatpush1.msra.mxu0 0.0
    %894 = vmatprep.subr.mxu0 0.0
    %895 = vmatpush1.msra.mxu0 0.0
    %896 = vmatprep.subr.mxu0 0.0
    %897 = vmatpush1.msra.mxu0 0.0
    %898 = vmatprep.subr.mxu0 0.0
    %899 = vmatpush1.msra.mxu0 0.0
    %900 = vmatprep.subr.mxu0 0.0
    %901 = vmatpush1.msra.mxu0 0.0
    %902 = vmatprep.mubr.f32.mxu0 0.0
    %903 = vmatmul.mubr.f32.gmra.mrb[0].mxu0 %v836
    %v904 = vpop.f32.mrb[0].mxu0
    %v905 = vadd.f32 0.0, %v904
    %v906 = vpop.f32.mrb[0].mxu0
    %907 = vdwg.mxu0
    %v908 = vadd.f32 %v832, %v905
    %v909 = vxor.u32 %v908, 2147483648
    %v910 = vmul.f32 %v909, 1.442695
    %v911 = vpow.pop %v910
    %v912 = vadd.f32 %v911, 1.0
    %v913 = vrcp.pop %v912
    %v914 = vmul.f32 1.0, %v913
    %v915 = vtanh.pop %v908
    %v916 = vmul.f32 %v914, %v825
    %918 = vrot.lane.b32.xlu0 %v915, 64
    %v919 = vpop.permute.xlu0 %918
    %v921 = vmul.f32 %v914, %v919
    %923 = vrot.lane.b32.xlu0 %v921, 32
    %v924 = vpop.permute.xlu0 %923
    %v926 = vadd.f32 %v916, %v924
    %v927 = vtanh.pop %v926
    %929 = vrot.lane.b32.xlu0 %v927, 64
    %v930 = vpop.permute.xlu0 %929
    %v932 = vmul.f32 %v914, %v930
    %v933 = vld [vmem:[%s4] sm:$0xff]
    %v934 = vld [vmem:[%s4 + $0x8] sm:$0xff]
    %v935 = vld [vmem:[%s4 + $0x10] sm:$0xff]
    %v936 = vld [vmem:[%s4 + $0x18] sm:$0xff]
    %v937 = vld [vmem:[%s5] sm:$0x3]
    %939 = vrot.lane.b32.xlu0 %v932, 32
    %v940 = vpop.permute.xlu0 %939
    %v941 = vsel %vm127, %v940, 0
    %943 = vmatprep.subr.mxu0 0.0
    %944 = vmatpush1.msra.mxu0 %v933
    %945 = vmatprep.subr.mxu0 0.0
    %946 = vmatpush1.msra.mxu0 %v934
    %947 = vmatprep.subr.mxu0 0.0
    %948 = vmatpush1.msra.mxu0 %v935
    %949 = vmatprep.subr.mxu0 0.0
    %950 = vmatpush1.msra.mxu0 %v936
    %951 = vmatprep.subr.mxu0 0.0
    %952 = vmatpush1.msra.mxu0 0.0
    %953 = vmatprep.subr.mxu0 0.0
    %954 = vmatpush1.msra.mxu0 0.0
    %955 = vmatprep.subr.mxu0 0.0
    %956 = vmatpush1.msra.mxu0 0.0
    %957 = vmatprep.subr.mxu0 0.0
    %958 = vmatpush1.msra.mxu0 0.0
    %959 = vmatprep.subr.mxu0 0.0
    %960 = vmatpush1.msra.mxu0 0.0
    %961 = vmatprep.subr.mxu0 0.0
    %962 = vmatpush1.msra.mxu0 0.0
    %963 = vmatprep.subr.mxu0 0.0
    %964 = vmatpush1.msra.mxu0 0.0
    %965 = vmatprep.subr.mxu0 0.0
    %966 = vmatpush1.msra.mxu0 0.0
    %967 = vmatprep.subr.mxu0 0.0
    %968 = vmatpush1.msra.mxu0 0.0
    %969 = vmatprep.subr.mxu0 0.0
    %970 = vmatpush1.msra.mxu0 0.0
    %971 = vmatprep.subr.mxu0 0.0
    %972 = vmatpush1.msra.mxu0 0.0
    %973 = vmatprep.subr.mxu0 0.0
    %974 = vmatpush1.msra.mxu0 0.0
    %975 = vmatprep.subr.mxu0 0.0
    %976 = vmatpush1.msra.mxu0 0.0
    %977 = vmatprep.subr.mxu0 0.0
    %978 = vmatpush1.msra.mxu0 0.0
    %979 = vmatprep.subr.mxu0 0.0
    %980 = vmatpush1.msra.mxu0 0.0
    %981 = vmatprep.subr.mxu0 0.0
    %982 = vmatpush1.msra.mxu0 0.0
    %983 = vmatprep.subr.mxu0 0.0
    %984 = vmatpush1.msra.mxu0 0.0
    %985 = vmatprep.subr.mxu0 0.0
    %986 = vmatpush1.msra.mxu0 0.0
    %987 = vmatprep.subr.mxu0 0.0
    %988 = vmatpush1.msra.mxu0 0.0
    %989 = vmatprep.subr.mxu0 0.0
    %990 = vmatpush1.msra.mxu0 0.0
    %991 = vmatprep.subr.mxu0 0.0
    %992 = vmatpush1.msra.mxu0 0.0
    %993 = vmatprep.subr.mxu0 0.0
    %994 = vmatpush1.msra.mxu0 0.0
    %995 = vmatprep.subr.mxu0 0.0
    %996 = vmatpush1.msra.mxu0 0.0
    %997 = vmatprep.subr.mxu0 0.0
    %998 = vmatpush1.msra.mxu0 0.0
    %999 = vmatprep.subr.mxu0 0.0
    %1000 = vmatpush1.msra.mxu0 0.0
    %1001 = vmatprep.subr.mxu0 0.0
    %1002 = vmatpush1.msra.mxu0 0.0
    %1003 = vmatprep.subr.mxu0 0.0
    %1004 = vmatpush1.msra.mxu0 0.0
    %1005 = vmatprep.subr.mxu0 0.0
    %1006 = vmatpush1.msra.mxu0 0.0
    %1007 = vmatprep.mubr.f32.mxu0 0.0
    %1008 = vmatmul.mubr.f32.gmra.mrb[0].mxu0 %v941
    %v1009 = vpop.f32.mrb[0].mxu0
    %v1010 = vadd.f32 %v937, %v1009
    %v1011 = vpop.f32.mrb[0].mxu0
    %1012 = vdwg.mxu0
    %vm1013 = vcmask 123904
    %1014 = vst.msk [vmem:[#allocation3] sm:$0x3] %vm1013, %v1010
    // Predicated region
    $region26: #{lstm_x1_x2_forward.1} parent=1 // pred_check
      _
    $region27: #{lstm_x1_x2_forward.1} parent=1 // pred_check_branch
      %1016 = sbr.rel (0) target = $region29
    $region28: #{lstm_x1_x2_forward.1} parent=1 // pred_region
      %s1018 = ssub.s32 32, 32
      %1019 = vsyncadd [#allocation4], %s1018
      %s1021 = sshll.u32 [#allocation3], 4
      %s1022 = int_to_ptr.vmem [resolvable:$true] %s1021
      %1024 = dma.vmem_to_hbm [thread:$0]  %s1022, 32, %s6, [#allocation4]
    $region29: #{lstm_x1_x2_forward.1} parent=1 // pred_fallthru
      _
    // Predicated region
    $region30: #{lstm_x1_x2_forward.1} parent=1 // pred_check
      _
    $region31: #{lstm_x1_x2_forward.1} parent=1 // pred_check_branch
      %1026 = sbr.rel (0) target = $region33
    $region32: #{lstm_x1_x2_forward.1} parent=1 // pred_region
      %1027 = dma.done [#allocation4], 32
    $region33: #{lstm_x1_x2_forward.1} parent=1 // pred_fallthru
      _
    %1028 = vsyncpa [#allocation4], 1

</llo_original>
